<compile_context>
chip_gen: v5e
topology: v5e:2x2
jax: 0.10.0
libtpu: 0.0.40
codegen_flags: <defaults>
</compile_context>

<pallas_src>
import jax
import jax.numpy as jnp
from jax.experimental import pallas as pl
from jax.experimental.pallas import tpu as pltpu

IN_DIM = 28 * 28          # 784, kept unpadded (Mosaic handles K=784)
HIDDEN_DIM = 256
W3_PAD = 128              # layer-3 N padded 1 -> 128 for a lane-aligned matmul
MAX_TILE_B = 1024         # batch rows per grid step


def _round_up(x, m):
    return (x + m - 1) // m * m


def discriminator_kernel(x_ref, w1_ref, b1_ref, w2_ref, b2_ref, w3_ref, b3_ref,
                         o_ref):
    # x arrives as f32 straight from HBM (no wrapper pad/cast passes); cast to
    # bf16 only to feed the MXU.  All elementwise math stays f32 (v5e-safe).
    x = x_ref[...].astype(jnp.bfloat16)                        # (tile_b, 784)

    # Layer 1: Linear(784 -> 256) + LeakyReLU(0.2)
    h = jnp.dot(x, w1_ref[...], preferred_element_type=jnp.float32)
    h = h + b1_ref[...]
    h = jnp.where(h > 0, h, 0.2 * h)

    # Layer 2: Linear(256 -> 256) + LeakyReLU(0.2)
    h = jnp.dot(h.astype(jnp.bfloat16), w2_ref[...],
                preferred_element_type=jnp.float32)
    h = h + b2_ref[...]
    h = jnp.where(h > 0, h, 0.2 * h)

    # Layer 3: Linear(256 -> 1) + Sigmoid.  w3 is zero-padded to 128 output
    # columns so the matmul is lane-aligned; only column 0 is real.  Bias,
    # sigmoid and the HBM store touch just that single column, so the output
    # writes 4 B/sample instead of a 512 B/sample padded slab.
    logits = jnp.dot(h.astype(jnp.bfloat16), w3_ref[...],
                     preferred_element_type=jnp.float32)       # (tile_b, 128)
    z = logits[:, :1] + b3_ref[...]                            # (tile_b, 1)
    o_ref[...] = pl.reciprocal(1.0 + jnp.exp(-z),
                               approx=False).astype(o_ref.dtype)


def discriminator_forward(img, params):
    """img: (B, 1, 28, 28) or (B, 784) float32 -> (B, 1) float32."""
    w1, b1, w2, b2, w3, b3 = params
    x = img.reshape(-1, IN_DIM).astype(jnp.float32)   # reshape is free
    B = x.shape[0]

    # Batch tiling: large tiles (per-step compute/DMA >> 0.35 us overhead) and
    # >= 2 grid steps whenever B >= 16 so v7x's two TensorCores both get work.
    tile_b = min(MAX_TILE_B, max(8, _round_up((B + 1) // 2, 8)))
    b_pad = _round_up(B, tile_b)
    if b_pad != B:
        # Only HBM pass over x, and only when B is not tile-aligned.
        x = jnp.pad(x, ((0, b_pad - B), (0, 0)))

    # One-time tiny weight prep: bf16 for the MXU, f32 biases.
    w1_b = w1.astype(jnp.bfloat16)
    w2_b = w2.astype(jnp.bfloat16)
    w3_b = jnp.pad(w3, ((0, 0), (0, W3_PAD - 1))).astype(jnp.bfloat16)

    grid = (b_pad // tile_b,)
    const = lambda i: (0, 0)   # weights/biases stay VMEM-resident across steps
    # NOTE: pipeline_mode=pl.Buffered(1) on the constant specs would shave a
    # little double-buffer VMEM, but VMEM is nowhere near the limit here, so
    # it is omitted to keep lowering maximally portable.

    out = pl.pallas_call(
        discriminator_kernel,
        out_shape=jax.ShapeDtypeStruct((b_pad, 1), jnp.float32),
        grid_spec=pltpu.PrefetchScalarGridSpec(
            num_scalar_prefetch=0,
            grid=grid,
            in_specs=[
                pl.BlockSpec((tile_b, IN_DIM), lambda i: (i, 0)),   # x
                pl.BlockSpec((IN_DIM, HIDDEN_DIM), const),          # w1
                pl.BlockSpec((1, HIDDEN_DIM), const),               # b1
                pl.BlockSpec((HIDDEN_DIM, HIDDEN_DIM), const),      # w2
                pl.BlockSpec((1, HIDDEN_DIM), const),               # b2
                pl.BlockSpec((HIDDEN_DIM, W3_PAD), const),          # w3
                pl.BlockSpec((1, 1), const),                        # b3
            ],
            out_specs=pl.BlockSpec((tile_b, 1), lambda i: (i, 0)),
        ),
        compiler_params=pltpu.CompilerParams(
            dimension_semantics=("parallel",)),
    )(x, w1_b, b1, w2_b, b2, w3_b, b3)

    # Padded batch rows (if any) carry garbage and are sliced off here.
    return out if b_pad == B else out[:B]


def discriminator_ref(img, params):
    """Pure-JAX f32 reference (matches the PyTorch module)."""
    w1, b1, w2, b2, w3, b3 = params
    x = img.reshape(-1, IN_DIM).astype(jnp.float32)
    h = x @ w1 + b1
    h = jnp.where(h > 0, h, 0.2 * h)
    h = h @ w2 + b2
    h = jnp.where(h > 0, h, 0.2 * h)
    h = h @ w3 + b3
    return jax.nn.sigmoid(h)


def init_params(key):
    """Deterministic synthetic init (uniform, fan-in scaled like nn.Linear)."""
    ks = jax.random.split(key, 6)

    def linear(kw, kb, fan_in, fan_out):
        bound = 1.0 / jnp.sqrt(jnp.float32(fan_in))
        w = jax.random.uniform(kw, (fan_in, fan_out), jnp.float32,
                               minval=-bound, maxval=bound)
        # biases kept 2D (1, fan_out) for clean TPU lane layout / broadcasting
        b = jax.random.uniform(kb, (1, fan_out), jnp.float32,
                               minval=-bound, maxval=bound)
        return w, b

    w1, b1 = linear(ks[0], ks[1], IN_DIM, HIDDEN_DIM)
    w2, b2 = linear(ks[2], ks[3], HIDDEN_DIM, HIDDEN_DIM)
    w3, b3 = linear(ks[4], ks[5], HIDDEN_DIM, 1)
    return (w1, b1, w2, b2, w3, b3)


if __name__ == "__main__":
    key = jax.random.PRNGKey(0)
    k_params, k_img, k_img2 = jax.random.split(key, 3)

    params = init_params(k_params)
    fwd = jax.jit(discriminator_forward)

    # Primary check: small aligned batch (single grid step, no padding).
    B = 8
    img = jax.random.normal(k_img, (B, 1, 28, 28), dtype=jnp.float32)
    out = jax.block_until_ready(fwd(img, params))
    assert out.shape == (B, 1), out.shape
    assert out.dtype == jnp.float32
    assert bool(jnp.all((out > 0.0) & (out < 1.0)))
    ref = discriminator_ref(img, params)
    err = float(jnp.max(jnp.abs(out - ref)))
    assert err < 3e-2, f"max abs err {err}"

    # Secondary check: unaligned batch -> exercises batch padding, the 2-step
    # ("parallel") grid, and the trailing row slice.
    B2 = 20
    img2 = jax.random.normal(k_img2, (B2, 1, 28, 28), dtype=jnp.float32)
    out2 = jax.block_until_ready(fwd(img2, params))
    assert out2.shape == (B2, 1), out2.shape
    ref2 = discriminator_ref(img2, params)
    err2 = float(jnp.max(jnp.abs(out2 - ref2)))
    assert err2 < 3e-2, f"max abs err {err2}"

    print("KERNEL_OK")
</pallas_src>

<mosaic_0001>
module attributes {stable_mosaic.version = 11 : i64} {
  func.func @discriminator_kernel(%arg0: i32, %arg1: memref<8x784xf32, #tpu.memory_space<vmem>>, %arg2: memref<784x256xbf16, #tpu.memory_space<vmem>>, %arg3: memref<1x256xf32, #tpu.memory_space<vmem>>, %arg4: memref<256x256xbf16, #tpu.memory_space<vmem>>, %arg5: memref<1x256xf32, #tpu.memory_space<vmem>>, %arg6: memref<256x128xbf16, #tpu.memory_space<vmem>>, %arg7: memref<1x1xf32, #tpu.memory_space<vmem>>, %arg8: memref<8x1xf32, #tpu.memory_space<vmem>>) attributes {dimension_semantics = [#tpu.dimension_semantics<parallel>], iteration_bounds = array<i64: 1>, scalar_prefetch = 0 : i64, scratch_operands = 0 : i64, tpu.core_type = #tpu.core_type<tc>, window_params = [{transform_indices = @transform_0, window_bounds = array<i64: 8, 784>}, {pipeline_mode = #tpu.pipeline_mode<synchronous>, transform_indices = @transform_1, window_bounds = array<i64: 784, 256>}, {pipeline_mode = #tpu.pipeline_mode<synchronous>, transform_indices = @transform_2, window_bounds = array<i64: 1, 256>}, {pipeline_mode = #tpu.pipeline_mode<synchronous>, transform_indices = @transform_3, window_bounds = array<i64: 256, 256>}, {pipeline_mode = #tpu.pipeline_mode<synchronous>, transform_indices = @transform_4, window_bounds = array<i64: 1, 256>}, {pipeline_mode = #tpu.pipeline_mode<synchronous>, transform_indices = @transform_5, window_bounds = array<i64: 256, 128>}, {pipeline_mode = #tpu.pipeline_mode<synchronous>, transform_indices = @transform_6, window_bounds = array<i64: 1, 1>}, {transform_indices = @transform_7, window_bounds = array<i64: 8, 1>}]} {
    %c0 = arith.constant 0 : index
    %c0_0 = arith.constant 0 : index
    %0 = vector.load %arg1[%c0, %c0_0] : memref<8x784xf32, #tpu.memory_space<vmem>>, vector<8x784xf32>
    %1 = arith.truncf %0 : vector<8x784xf32> to vector<8x784xbf16>
    %c0_1 = arith.constant 0 : index
    %c0_2 = arith.constant 0 : index
    %2 = vector.load %arg2[%c0_1, %c0_2] : memref<784x256xbf16, #tpu.memory_space<vmem>>, vector<784x256xbf16>
    %cst = arith.constant dense<0.000000e+00> : vector<8x256xf32>
    %3 = tpu.matmul %1, %2, %cst {dimension_numbers = #tpu.dot_dimension_numbers<[1], [0], [0], [1], [0, 0, 1, 1], [], []>} : vector<8x784xbf16>, vector<784x256xbf16>, vector<8x256xf32> -> vector<8x256xf32>
    %c0_3 = arith.constant 0 : index
    %c0_4 = arith.constant 0 : index
    %4 = vector.load %arg3[%c0_3, %c0_4] : memref<1x256xf32, #tpu.memory_space<vmem>>, vector<1x256xf32>
    %5 = vector.broadcast %4 : vector<1x256xf32> to vector<8x256xf32>
    %6 = arith.addf %3, %5 : vector<8x256xf32>
    %cst_5 = arith.constant 0.000000e+00 : f32
    %7 = vector.broadcast %cst_5 : f32 to vector<8x256xf32>
    %8 = arith.cmpf ogt, %6, %7 : vector<8x256xf32>
    %cst_6 = arith.constant 2.000000e-01 : f32
    %9 = vector.broadcast %cst_6 : f32 to vector<8x256xf32>
    %10 = arith.mulf %9, %6 : vector<8x256xf32>
    %11 = arith.select %8, %6, %10 : vector<8x256xi1>, vector<8x256xf32>
    %12 = arith.truncf %11 : vector<8x256xf32> to vector<8x256xbf16>
    %c0_7 = arith.constant 0 : index
    %c0_8 = arith.constant 0 : index
    %13 = vector.load %arg4[%c0_7, %c0_8] : memref<256x256xbf16, #tpu.memory_space<vmem>>, vector<256x256xbf16>
    %cst_9 = arith.constant dense<0.000000e+00> : vector<8x256xf32>
    %14 = tpu.matmul %12, %13, %cst_9 {dimension_numbers = #tpu.dot_dimension_numbers<[1], [0], [0], [1], [0, 0, 1, 1], [], []>} : vector<8x256xbf16>, vector<256x256xbf16>, vector<8x256xf32> -> vector<8x256xf32>
    %c0_10 = arith.constant 0 : index
    %c0_11 = arith.constant 0 : index
    %15 = vector.load %arg5[%c0_10, %c0_11] : memref<1x256xf32, #tpu.memory_space<vmem>>, vector<1x256xf32>
    %16 = vector.broadcast %15 : vector<1x256xf32> to vector<8x256xf32>
    %17 = arith.addf %14, %16 : vector<8x256xf32>
    %cst_12 = arith.constant 0.000000e+00 : f32
    %18 = vector.broadcast %cst_12 : f32 to vector<8x256xf32>
    %19 = arith.cmpf ogt, %17, %18 : vector<8x256xf32>
    %cst_13 = arith.constant 2.000000e-01 : f32
    %20 = vector.broadcast %cst_13 : f32 to vector<8x256xf32>
    %21 = arith.mulf %20, %17 : vector<8x256xf32>
    %22 = arith.select %19, %17, %21 : vector<8x256xi1>, vector<8x256xf32>
    %23 = arith.truncf %22 : vector<8x256xf32> to vector<8x256xbf16>
    %c0_14 = arith.constant 0 : index
    %c0_15 = arith.constant 0 : index
    %24 = vector.load %arg6[%c0_14, %c0_15] : memref<256x128xbf16, #tpu.memory_space<vmem>>, vector<256x128xbf16>
    %cst_16 = arith.constant dense<0.000000e+00> : vector<8x128xf32>
    %25 = tpu.matmul %23, %24, %cst_16 {dimension_numbers = #tpu.dot_dimension_numbers<[1], [0], [0], [1], [0, 0, 1, 1], [], []>} : vector<8x256xbf16>, vector<256x128xbf16>, vector<8x128xf32> -> vector<8x128xf32>
    %26 = vector.extract_strided_slice %25 {offsets = [0, 0], sizes = [8, 1], strides = [1, 1]} : vector<8x128xf32> to vector<8x1xf32>
    %c0_17 = arith.constant 0 : index
    %c0_18 = arith.constant 0 : index
    %27 = vector.load %arg7[%c0_17, %c0_18] : memref<1x1xf32, #tpu.memory_space<vmem>>, vector<1x1xf32>
    %28 = vector.broadcast %27 : vector<1x1xf32> to vector<8x1xf32>
    %29 = arith.addf %26, %28 : vector<8x1xf32>
    %cst_19 = arith.constant 0.000000e+00 : f32
    %30 = vector.broadcast %cst_19 : f32 to vector<8x1xf32>
    %31 = arith.subf %30, %29 : vector<8x1xf32>
    %32 = math.exp %31 : vector<8x1xf32>
    %cst_20 = arith.constant 1.000000e+00 : f32
    %33 = vector.broadcast %cst_20 : f32 to vector<8x1xf32>
    %34 = arith.addf %33, %32 : vector<8x1xf32>
    %35 = tpu.reciprocal %34 : vector<8x1xf32> -> vector<8x1xf32>
    %c0_21 = arith.constant 0 : index
    %c0_22 = arith.constant 0 : index
    %36 = vector.load %arg8[%c0_21, %c0_22] : memref<8x1xf32, #tpu.memory_space<vmem>>, vector<8x1xf32>
    tpu.vector_store %arg8[%c0_21, %c0_22], %35 {strides = array<i32>} : memref<8x1xf32, #tpu.memory_space<vmem>>, vector<8x1xf32>,
    return
  }
  func.func @transform_0(%arg0: i32) -> (i32, i32) {
    %c0_i32 = arith.constant 0 : i32
    %c0_i32_0 = arith.constant 0 : i32
    return %arg0, %c0_i32 : i32, i32
  }
  func.func @transform_1(%arg0: i32) -> (i32, i32) {
    %c0_i32 = arith.constant 0 : i32
    %c0_i32_0 = arith.constant 0 : i32
    %c0_i32_1 = arith.constant 0 : i32
    return %c0_i32, %c0_i32_0 : i32, i32
  }
  func.func @transform_2(%arg0: i32) -> (i32, i32) {
    %c0_i32 = arith.constant 0 : i32
    %c0_i32_0 = arith.constant 0 : i32
    %c0_i32_1 = arith.constant 0 : i32
    return %c0_i32, %c0_i32_0 : i32, i32
  }
  func.func @transform_3(%arg0: i32) -> (i32, i32) {
    %c0_i32 = arith.constant 0 : i32
    %c0_i32_0 = arith.constant 0 : i32
    %c0_i32_1 = arith.constant 0 : i32
    return %c0_i32, %c0_i32_0 : i32, i32
  }
  func.func @transform_4(%arg0: i32) -> (i32, i32) {
    %c0_i32 = arith.constant 0 : i32
    %c0_i32_0 = arith.constant 0 : i32
    %c0_i32_1 = arith.constant 0 : i32
    return %c0_i32, %c0_i32_0 : i32, i32
  }
  func.func @transform_5(%arg0: i32) -> (i32, i32) {
    %c0_i32 = arith.constant 0 : i32
    %c0_i32_0 = arith.constant 0 : i32
    %c0_i32_1 = arith.constant 0 : i32
    return %c0_i32, %c0_i32_0 : i32, i32
  }
  func.func @transform_6(%arg0: i32) -> (i32, i32) {
    %c0_i32 = arith.constant 0 : i32
    %c0_i32_0 = arith.constant 0 : i32
    %c0_i32_1 = arith.constant 0 : i32
    return %c0_i32, %c0_i32_0 : i32, i32
  }
  func.func @transform_7(%arg0: i32) -> (i32, i32) {
    %c0_i32 = arith.constant 0 : i32
    %c0_i32_0 = arith.constant 0 : i32
    return %arg0, %c0_i32 : i32, i32
  }
}

</mosaic_0001>

<llo_original>
// kernel: discriminator_forward.1
$region0: #{discriminator_forward.1}
  #allocation0 [shape = 'u32[]', space=smem, size = 0x4, offset = 0x4, fixed_abs, tag = 'smem constant byte address 0x4 - core index']
  #allocation1 [shape = 'u32[72,128]{1,0:T(1,128)}', space=vmem, size = 0x9000, scoped, tag = 'internal scratch']
  #allocation2 [shape = 'f32[1,1]{1,0:T(1,128)S(1)}', space=vmem, size = 0x200, scoped, tag = 'scoped memory for discriminator_forward.1']
  %s0 = inlined_call_operand.vmem [shape: f32[8,784], index: 0, kind: input, shape index: {}]
  %s1 = inlined_call_operand.vmem [shape: bf16[784,256], index: 1, kind: input, shape index: {}]
  %s2 = inlined_call_operand.vmem [shape: f32[1,256], index: 2, kind: input, shape index: {}]
  %s3 = inlined_call_operand.vmem [shape: bf16[256,256], index: 3, kind: input, shape index: {}]
  %s4 = inlined_call_operand.vmem [shape: f32[1,256], index: 4, kind: input, shape index: {}]
  %s5 = inlined_call_operand.vmem [shape: bf16[256,128], index: 5, kind: input, shape index: {}]
  %s6 = inlined_call_operand.<no memory space> [shape: f32[1,1], index: 6, kind: input, shape index: {}]
  %s7 = inlined_call_operand.vmem [shape: f32[8,1], index: 7, kind: output, shape index: {}]
  %s8 = sld [smem:[#allocation0]]
  $region38: #{discriminator_forward.1} parent=0
    _
  %s10 = ssub.s32 1, %s8
  %s11 = scalar_select 0, %s10, %s8
  %v12 = vstv %s6
  %13 = vst [vmem:[#allocation2] sm:$0x1] %v12
  // Predicated region
  $region2: #{discriminator_forward.1} parent=0 // pred_check
    _
  $region3: #{discriminator_forward.1} parent=0 // pred_check_branch
    %15 = sbr.rel (0) target = $region5
  $region4: #{discriminator_forward.1} parent=0 // pred_region
    _
  $region5: #{discriminator_forward.1} parent=0 // pred_fallthru
    _
  // Predicated region
  $region6: #{discriminator_forward.1} parent=0 // pred_check
    _
  $region7: #{discriminator_forward.1} parent=0 // pred_check_branch
    %17 = sbr.rel (0) target = $region9
  $region8: #{discriminator_forward.1} parent=0 // pred_region
    _
  $region9: #{discriminator_forward.1} parent=0 // pred_fallthru
    _
  // Predicated region
  $region10: #{discriminator_forward.1} parent=0 // pred_check
    _
  $region11: #{discriminator_forward.1} parent=0 // pred_check_branch
    %19 = sbr.rel (0) target = $region13
  $region12: #{discriminator_forward.1} parent=0 // pred_region
    _
  $region13: #{discriminator_forward.1} parent=0 // pred_fallthru
    _
  // Predicated region
  $region14: #{discriminator_forward.1} parent=0 // pred_check
    _
  $region15: #{discriminator_forward.1} parent=0 // pred_check_branch
    %21 = sbr.rel (0) target = $region17
  $region16: #{discriminator_forward.1} parent=0 // pred_region
    _
  $region17: #{discriminator_forward.1} parent=0 // pred_fallthru
    _
  // Predicated region
  $region18: #{discriminator_forward.1} parent=0 // pred_check
    _
  $region19: #{discriminator_forward.1} parent=0 // pred_check_branch
    %23 = sbr.rel (0) target = $region21
  $region20: #{discriminator_forward.1} parent=0 // pred_region
    _
  $region21: #{discriminator_forward.1} parent=0 // pred_fallthru
    _
  // Predicated region
  $region22: #{discriminator_forward.1} parent=0 // pred_check
    _
  $region23: #{discriminator_forward.1} parent=0 // pred_check_branch
    %25 = sbr.rel (0) target = $region25
  $region24: #{discriminator_forward.1} parent=0 // pred_region
    _
  $region25: #{discriminator_forward.1} parent=0 // pred_fallthru
    _
  // Predicated region
  $region26: #{discriminator_forward.1} parent=0 // pred_check
    _
  $region27: #{discriminator_forward.1} parent=0 // pred_check_branch
    %27 = sbr.rel (0) target = $region29
  $region28: #{discriminator_forward.1} parent=0 // pred_region
    _
  $region29: #{discriminator_forward.1} parent=0 // pred_fallthru
    _
  %v29 = vld [vmem:[%s0] sm:$0xff]
  %v30 = vld [vmem:[%s0 + $0x8] sm:$0xff]
  %v31 = vld [vmem:[%s0 + $0x10] sm:$0xff]
  %v32 = vld [vmem:[%s0 + $0x18] sm:$0xff]
  %v33 = vld [vmem:[%s0 + $0x20] sm:$0xff]
  %v34 = vld [vmem:[%s0 + $0x28] sm:$0xff]
  %v35 = vld [vmem:[%s0 + $0x30] sm:$0xff]
  %v36 = vpack.c.bf16 %v29, %v29
  %v37 = vpack.c.bf16 %v30, %v30
  %v38 = vpack.c.bf16 %v31, %v31
  %v39 = vpack.c.bf16 %v32, %v32
  %v40 = vpack.c.bf16 %v33, %v33
  %v41 = vpack.c.bf16 %v34, %v34
  %v42 = vpack.c.bf16 %v35, %v35
  %v43 = vld [vmem:[%s1] sm:$0xff]
  %v44 = vld [vmem:[%s1 + $0x8] sm:$0xff]
  %v45 = vld [vmem:[%s1 + $0x10] sm:$0xff]
  %v46 = vld [vmem:[%s1 + $0x18] sm:$0xff]
  %v47 = vld [vmem:[%s1 + $0x20] sm:$0xff]
  %v48 = vld [vmem:[%s1 + $0x28] sm:$0xff]
  %v49 = vld [vmem:[%s1 + $0x30] sm:$0xff]
  %v50 = vld [vmem:[%s1 + $0x38] sm:$0xff]
  %v51 = vld [vmem:[%s1 + $0x40] sm:$0xff]
  %v52 = vld [vmem:[%s1 + $0x48] sm:$0xff]
  %v53 = vld [vmem:[%s1 + $0x50] sm:$0xff]
  %v54 = vld [vmem:[%s1 + $0x58] sm:$0xff]
  %v55 = vld [vmem:[%s1 + $0x60] sm:$0xff]
  %v56 = vld [vmem:[%s1 + $0x68] sm:$0xff]
  %v57 = vld [vmem:[%s1 + $0x70] sm:$0xff]
  %v58 = vld [vmem:[%s1 + $0x78] sm:$0xff]
  %v59 = vld [vmem:[%s1 + $0x80] sm:$0xff]
  %v60 = vld [vmem:[%s1 + $0x88] sm:$0xff]
  %v61 = vld [vmem:[%s1 + $0x90] sm:$0xff]
  %v62 = vld [vmem:[%s1 + $0x98] sm:$0xff]
  %v63 = vld [vmem:[%s1 + $0xa0] sm:$0xff]
  %v64 = vld [vmem:[%s1 + $0xa8] sm:$0xff]
  %v65 = vld [vmem:[%s1 + $0xb0] sm:$0xff]
  %v66 = vld [vmem:[%s1 + $0xb8] sm:$0xff]
  %v67 = vld [vmem:[%s1 + $0xc0] sm:$0xff]
  %v68 = vld [vmem:[%s1 + $0xc8] sm:$0xff]
  %v69 = vld [vmem:[%s1 + $0xd0] sm:$0xff]
  %v70 = vld [vmem:[%s1 + $0xd8] sm:$0xff]
  %v71 = vld [vmem:[%s1 + $0xe0] sm:$0xff]
  %v72 = vld [vmem:[%s1 + $0xe8] sm:$0xff]
  %v73 = vld [vmem:[%s1 + $0xf0] sm:$0xff]
  %v74 = vld [vmem:[%s1 + $0xf8] sm:$0xff]
  %v75 = vld [vmem:[%s1 + $0x100] sm:$0xff]
  %v76 = vld [vmem:[%s1 + $0x108] sm:$0xff]
  %v77 = vld [vmem:[%s1 + $0x110] sm:$0xff]
  %v78 = vld [vmem:[%s1 + $0x118] sm:$0xff]
  %v79 = vld [vmem:[%s1 + $0x120] sm:$0xff]
  %v80 = vld [vmem:[%s1 + $0x128] sm:$0xff]
  %v81 = vld [vmem:[%s1 + $0x130] sm:$0xff]
  %v82 = vld [vmem:[%s1 + $0x138] sm:$0xff]
  %v83 = vld [vmem:[%s1 + $0x140] sm:$0xff]
  %v84 = vld [vmem:[%s1 + $0x148] sm:$0xff]
  %v85 = vld [vmem:[%s1 + $0x150] sm:$0xff]
  %v86 = vld [vmem:[%s1 + $0x158] sm:$0xff]
  %v87 = vld [vmem:[%s1 + $0x160] sm:$0xff]
  %v88 = vld [vmem:[%s1 + $0x168] sm:$0xff]
  %v89 = vld [vmem:[%s1 + $0x170] sm:$0xff]
  %v90 = vld [vmem:[%s1 + $0x178] sm:$0xff]
  %v91 = vld [vmem:[%s1 + $0x180] sm:$0xff]
  %v92 = vld [vmem:[%s1 + $0x188] sm:$0xff]
  %v93 = vld [vmem:[%s1 + $0x190] sm:$0xff]
  %v94 = vld [vmem:[%s1 + $0x198] sm:$0xff]
  %v95 = vld [vmem:[%s1 + $0x1a0] sm:$0xff]
  %v96 = vld [vmem:[%s1 + $0x1a8] sm:$0xff]
  %v97 = vld [vmem:[%s1 + $0x1b0] sm:$0xff]
  %v98 = vld [vmem:[%s1 + $0x1b8] sm:$0xff]
  %v99 = vld [vmem:[%s1 + $0x1c0] sm:$0xff]
  %v100 = vld [vmem:[%s1 + $0x1c8] sm:$0xff]
  %v101 = vld [vmem:[%s1 + $0x1d0] sm:$0xff]
  %v102 = vld [vmem:[%s1 + $0x1d8] sm:$0xff]
  %v103 = vld [vmem:[%s1 + $0x1e0] sm:$0xff]
  %v104 = vld [vmem:[%s1 + $0x1e8] sm:$0xff]
  %v105 = vld [vmem:[%s1 + $0x1f0] sm:$0xff]
  %v106 = vld [vmem:[%s1 + $0x1f8] sm:$0xff]
  %v107 = vld [vmem:[%s1 + $0x200] sm:$0xff]
  %v108 = vld [vmem:[%s1 + $0x208] sm:$0xff]
  %v109 = vld [vmem:[%s1 + $0x210] sm:$0xff]
  %v110 = vld [vmem:[%s1 + $0x218] sm:$0xff]
  %v111 = vld [vmem:[%s1 + $0x220] sm:$0xff]
  %v112 = vld [vmem:[%s1 + $0x228] sm:$0xff]
  %v113 = vld [vmem:[%s1 + $0x230] sm:$0xff]
  %v114 = vld [vmem:[%s1 + $0x238] sm:$0xff]
  %v115 = vld [vmem:[%s1 + $0x240] sm:$0xff]
  %v116 = vld [vmem:[%s1 + $0x248] sm:$0xff]
  %v117 = vld [vmem:[%s1 + $0x250] sm:$0xff]
  %v118 = vld [vmem:[%s1 + $0x258] sm:$0xff]
  %v119 = vld [vmem:[%s1 + $0x260] sm:$0xff]
  %v120 = vld [vmem:[%s1 + $0x268] sm:$0xff]
  %v121 = vld [vmem:[%s1 + $0x270] sm:$0xff]
  %v122 = vld [vmem:[%s1 + $0x278] sm:$0xff]
  %v123 = vld [vmem:[%s1 + $0x280] sm:$0xff]
  %v124 = vld [vmem:[%s1 + $0x288] sm:$0xff]
  %v125 = vld [vmem:[%s1 + $0x290] sm:$0xff]
  %v126 = vld [vmem:[%s1 + $0x298] sm:$0xff]
  %v127 = vld [vmem:[%s1 + $0x2a0] sm:$0xff]
  %v128 = vld [vmem:[%s1 + $0x2a8] sm:$0xff]
  %v129 = vld [vmem:[%s1 + $0x2b0] sm:$0xff]
  %v130 = vld [vmem:[%s1 + $0x2b8] sm:$0xff]
  %v131 = vld [vmem:[%s1 + $0x2c0] sm:$0xff]
  %v132 = vld [vmem:[%s1 + $0x2c8] sm:$0xff]
  %v133 = vld [vmem:[%s1 + $0x2d0] sm:$0xff]
  %v134 = vld [vmem:[%s1 + $0x2d8] sm:$0xff]
  %v135 = vld [vmem:[%s1 + $0x2e0] sm:$0xff]
  %v136 = vld [vmem:[%s1 + $0x2e8] sm:$0xff]
  %v137 = vld [vmem:[%s1 + $0x2f0] sm:$0xff]
  %v138 = vld [vmem:[%s1 + $0x2f8] sm:$0xff]
  %v139 = vld [vmem:[%s1 + $0x300] sm:$0xff]
  %v140 = vld [vmem:[%s1 + $0x308] sm:$0xff]
  %v141 = vld [vmem:[%s2] sm:$0x3]
  %v143 = vperm.slane %v141, 0
  %v144 = vperm.slane %v141, 1
  %v245 = vunpack.c.l.b16 %v43
  %v246 = vunpack.c.h.b16 %v43
  %v247 = vunpack.c.l.b16 %v44
  %v248 = vunpack.c.h.b16 %v44
  %v249 = vunpack.c.l.b16 %v45
  %v250 = vunpack.c.h.b16 %v45
  %v251 = vunpack.c.l.b16 %v46
  %v252 = vunpack.c.h.b16 %v46
  %v253 = vunpack.c.l.b16 %v47
  %v254 = vunpack.c.h.b16 %v47
  %v255 = vunpack.c.l.b16 %v48
  %v256 = vunpack.c.h.b16 %v48
  %v257 = vunpack.c.l.b16 %v49
  %v258 = vunpack.c.h.b16 %v49
  %v259 = vunpack.c.l.b16 %v50
  %v260 = vunpack.c.h.b16 %v50
  %v261 = vunpack.c.l.b16 %v51
  %v262 = vunpack.c.h.b16 %v51
  %v263 = vunpack.c.l.b16 %v52
  %v264 = vunpack.c.h.b16 %v52
  %v265 = vunpack.c.l.b16 %v53
  %v266 = vunpack.c.h.b16 %v53
  %v267 = vunpack.c.l.b16 %v54
  %v268 = vunpack.c.h.b16 %v54
  %v269 = vunpack.c.l.b16 %v55
  %v270 = vunpack.c.h.b16 %v55
  %v271 = vunpack.c.l.b16 %v56
  %v272 = vunpack.c.h.b16 %v56
  %v273 = vunpack.c.l.b16 %v57
  %v274 = vunpack.c.h.b16 %v57
  %v275 = vunpack.c.l.b16 %v58
  %v276 = vunpack.c.h.b16 %v58
  %v277 = vunpack.c.l.b16 %v59
  %v278 = vunpack.c.h.b16 %v59
  %v279 = vunpack.c.l.b16 %v60
  %v280 = vunpack.c.h.b16 %v60
  %v281 = vunpack.c.l.b16 %v61
  %v282 = vunpack.c.h.b16 %v61
  %v283 = vunpack.c.l.b16 %v62
  %v284 = vunpack.c.h.b16 %v62
  %v285 = vunpack.c.l.b16 %v63
  %v286 = vunpack.c.h.b16 %v63
  %v287 = vunpack.c.l.b16 %v64
  %v288 = vunpack.c.h.b16 %v64
  %v289 = vunpack.c.l.b16 %v65
  %v290 = vunpack.c.h.b16 %v65
  %v291 = vunpack.c.l.b16 %v66
  %v292 = vunpack.c.h.b16 %v66
  %v293 = vunpack.c.l.b16 %v67
  %v294 = vunpack.c.h.b16 %v67
  %v295 = vunpack.c.l.b16 %v68
  %v296 = vunpack.c.h.b16 %v68
  %v297 = vunpack.c.l.b16 %v69
  %v298 = vunpack.c.h.b16 %v69
  %v299 = vunpack.c.l.b16 %v70
  %v300 = vunpack.c.h.b16 %v70
  %v301 = vunpack.c.l.b16 %v71
  %v302 = vunpack.c.h.b16 %v71
  %v303 = vunpack.c.l.b16 %v72
  %v304 = vunpack.c.h.b16 %v72
  %v305 = vunpack.c.l.b16 %v73
  %v306 = vunpack.c.h.b16 %v73
  %v307 = vunpack.c.l.b16 %v74
  %v308 = vunpack.c.h.b16 %v74
  %v309 = vunpack.c.l.b16 %v75
  %v310 = vunpack.c.h.b16 %v75
  %v311 = vunpack.c.l.b16 %v76
  %v312 = vunpack.c.h.b16 %v76
  %v313 = vunpack.c.l.b16 %v77
  %v314 = vunpack.c.h.b16 %v77
  %v315 = vunpack.c.l.b16 %v78
  %v316 = vunpack.c.h.b16 %v78
  %v317 = vunpack.c.l.b16 %v79
  %v318 = vunpack.c.h.b16 %v79
  %v319 = vunpack.c.l.b16 %v80
  %v320 = vunpack.c.h.b16 %v80
  %v321 = vunpack.c.l.b16 %v81
  %v322 = vunpack.c.h.b16 %v81
  %v323 = vunpack.c.l.b16 %v82
  %v324 = vunpack.c.h.b16 %v82
  %v325 = vunpack.c.l.b16 %v83
  %v326 = vunpack.c.h.b16 %v83
  %v327 = vunpack.c.l.b16 %v84
  %v328 = vunpack.c.h.b16 %v84
  %v329 = vunpack.c.l.b16 %v85
  %v330 = vunpack.c.h.b16 %v85
  %v331 = vunpack.c.l.b16 %v86
  %v332 = vunpack.c.h.b16 %v86
  %v333 = vunpack.c.l.b16 %v87
  %v334 = vunpack.c.h.b16 %v87
  %v335 = vunpack.c.l.b16 %v88
  %v336 = vunpack.c.h.b16 %v88
  %v337 = vunpack.c.l.b16 %v89
  %v338 = vunpack.c.h.b16 %v89
  %v339 = vunpack.c.l.b16 %v90
  %v340 = vunpack.c.h.b16 %v90
  %v341 = vunpack.c.l.b16 %v91
  %v342 = vunpack.c.h.b16 %v91
  %v343 = vunpack.c.l.b16 %v92
  %v344 = vunpack.c.h.b16 %v92
  %v345 = vunpack.c.l.b16 %v93
  %v346 = vunpack.c.h.b16 %v93
  %v347 = vunpack.c.l.b16 %v94
  %v348 = vunpack.c.h.b16 %v94
  %v349 = vunpack.c.l.b16 %v95
  %v350 = vunpack.c.h.b16 %v95
  %v351 = vunpack.c.l.b16 %v96
  %v352 = vunpack.c.h.b16 %v96
  %v353 = vunpack.c.l.b16 %v97
  %v354 = vunpack.c.h.b16 %v97
  %v355 = vunpack.c.l.b16 %v98
  %v356 = vunpack.c.h.b16 %v98
  %v357 = vunpack.c.l.b16 %v99
  %v358 = vunpack.c.h.b16 %v99
  %v359 = vunpack.c.l.b16 %v100
  %v360 = vunpack.c.h.b16 %v100
  %v361 = vunpack.c.l.b16 %v101
  %v362 = vunpack.c.h.b16 %v101
  %v363 = vunpack.c.l.b16 %v102
  %v364 = vunpack.c.h.b16 %v102
  %v365 = vunpack.c.l.b16 %v103
  %v366 = vunpack.c.h.b16 %v103
  %v367 = vunpack.c.l.b16 %v104
  %v368 = vunpack.c.h.b16 %v104
  %v369 = vunpack.c.l.b16 %v105
  %v370 = vunpack.c.h.b16 %v105
  %v371 = vunpack.c.l.b16 %v106
  %v372 = vunpack.c.h.b16 %v106
  %v373 = vunpack.c.l.b16 %v107
  %v374 = vunpack.c.h.b16 %v107
  %v375 = vunpack.c.l.b16 %v108
  %v376 = vunpack.c.h.b16 %v108
  %v377 = vunpack.c.l.b16 %v109
  %v378 = vunpack.c.h.b16 %v109
  %v379 = vunpack.c.l.b16 %v110
  %v380 = vunpack.c.h.b16 %v110
  %v381 = vunpack.c.l.b16 %v111
  %v382 = vunpack.c.h.b16 %v111
  %v383 = vunpack.c.l.b16 %v112
  %v384 = vunpack.c.h.b16 %v112
  %v385 = vunpack.c.l.b16 %v113
  %v386 = vunpack.c.h.b16 %v113
  %v387 = vunpack.c.l.b16 %v114
  %v388 = vunpack.c.h.b16 %v114
  %v389 = vunpack.c.l.b16 %v115
  %v390 = vunpack.c.h.b16 %v115
  %v391 = vunpack.c.l.b16 %v116
  %v392 = vunpack.c.h.b16 %v116
  %v393 = vunpack.c.l.b16 %v117
  %v394 = vunpack.c.h.b16 %v117
  %v395 = vunpack.c.l.b16 %v118
  %v396 = vunpack.c.h.b16 %v118
  %v397 = vunpack.c.l.b16 %v119
  %v398 = vunpack.c.h.b16 %v119
  %v399 = vunpack.c.l.b16 %v120
  %v400 = vunpack.c.h.b16 %v120
  %v401 = vunpack.c.l.b16 %v121
  %v402 = vunpack.c.h.b16 %v121
  %v403 = vunpack.c.l.b16 %v122
  %v404 = vunpack.c.h.b16 %v122
  %v405 = vunpack.c.l.b16 %v123
  %v406 = vunpack.c.h.b16 %v123
  %v407 = vunpack.c.l.b16 %v124
  %v408 = vunpack.c.h.b16 %v124
  %v409 = vunpack.c.l.b16 %v125
  %v410 = vunpack.c.h.b16 %v125
  %v411 = vunpack.c.l.b16 %v126
  %v412 = vunpack.c.h.b16 %v126
  %v413 = vunpack.c.l.b16 %v127
  %v414 = vunpack.c.h.b16 %v127
  %v415 = vunpack.c.l.b16 %v128
  %v416 = vunpack.c.h.b16 %v128
  %v417 = vunpack.c.l.b16 %v129
  %v418 = vunpack.c.h.b16 %v129
  %v419 = vunpack.c.l.b16 %v130
  %v420 = vunpack.c.h.b16 %v130
  %v421 = vunpack.c.l.b16 %v131
  %v422 = vunpack.c.h.b16 %v131
  %v423 = vunpack.c.l.b16 %v132
  %v424 = vunpack.c.h.b16 %v132
  %v425 = vunpack.c.l.b16 %v133
  %v426 = vunpack.c.h.b16 %v133
  %v427 = vunpack.c.l.b16 %v134
  %v428 = vunpack.c.h.b16 %v134
  %v429 = vunpack.c.l.b16 %v135
  %v430 = vunpack.c.h.b16 %v135
  %v431 = vunpack.c.l.b16 %v136
  %v432 = vunpack.c.h.b16 %v136
  %v433 = vunpack.c.l.b16 %v137
  %v434 = vunpack.c.h.b16 %v137
  %v435 = vunpack.c.l.b16 %v138
  %v436 = vunpack.c.h.b16 %v138
  %v437 = vunpack.c.l.b16 %v139
  %v438 = vunpack.c.h.b16 %v139
  %v439 = vunpack.c.l.b16 %v140
  %v440 = vunpack.c.h.b16 %v140
  %v441 = vpack.c.b16 %v247, %v245
  %v442 = vpack.c.b16 %v248, %v246
  %v443 = vpack.c.b16 %v251, %v249
  %v444 = vpack.c.b16 %v252, %v250
  %v445 = vpack.c.b16 %v255, %v253
  %v446 = vpack.c.b16 %v256, %v254
  %v447 = vpack.c.b16 %v259, %v257
  %v448 = vpack.c.b16 %v260, %v258
  %v449 = vpack.c.b16 %v263, %v261
  %v450 = vpack.c.b16 %v264, %v262
  %v451 = vpack.c.b16 %v267, %v265
  %v452 = vpack.c.b16 %v268, %v266
  %v453 = vpack.c.b16 %v271, %v269
  %v454 = vpack.c.b16 %v272, %v270
  %v455 = vpack.c.b16 %v275, %v273
  %v456 = vpack.c.b16 %v276, %v274
  %v457 = vpack.c.b16 %v279, %v277
  %v458 = vpack.c.b16 %v280, %v278
  %v459 = vpack.c.b16 %v283, %v281
  %v460 = vpack.c.b16 %v284, %v282
  %v461 = vpack.c.b16 %v287, %v285
  %v462 = vpack.c.b16 %v288, %v286
  %v463 = vpack.c.b16 %v291, %v289
  %v464 = vpack.c.b16 %v292, %v290
  %v465 = vpack.c.b16 %v295, %v293
  %v466 = vpack.c.b16 %v296, %v294
  %v467 = vpack.c.b16 %v299, %v297
  %v468 = vpack.c.b16 %v300, %v298
  %v469 = vpack.c.b16 %v303, %v301
  %v470 = vpack.c.b16 %v304, %v302
  %v471 = vpack.c.b16 %v307, %v305
  %v472 = vpack.c.b16 %v308, %v306
  %v473 = vpack.c.b16 %v311, %v309
  %v474 = vpack.c.b16 %v312, %v310
  %v475 = vpack.c.b16 %v315, %v313
  %v476 = vpack.c.b16 %v316, %v314
  %v477 = vpack.c.b16 %v319, %v317
  %v478 = vpack.c.b16 %v320, %v318
  %v479 = vpack.c.b16 %v323, %v321
  %v480 = vpack.c.b16 %v324, %v322
  %v481 = vpack.c.b16 %v327, %v325
  %v482 = vpack.c.b16 %v328, %v326
  %v483 = vpack.c.b16 %v331, %v329
  %v484 = vpack.c.b16 %v332, %v330
  %v485 = vpack.c.b16 %v335, %v333
  %v486 = vpack.c.b16 %v336, %v334
  %v487 = vpack.c.b16 %v339, %v337
  %v488 = vpack.c.b16 %v340, %v338
  %v489 = vpack.c.b16 %v343, %v341
  %v490 = vpack.c.b16 %v344, %v342
  %v491 = vpack.c.b16 %v347, %v345
  %v492 = vpack.c.b16 %v348, %v346
  %v493 = vpack.c.b16 %v351, %v349
  %v494 = vpack.c.b16 %v352, %v350
  %v495 = vpack.c.b16 %v355, %v353
  %v496 = vpack.c.b16 %v356, %v354
  %v497 = vpack.c.b16 %v359, %v357
  %v498 = vpack.c.b16 %v360, %v358
  %v499 = vpack.c.b16 %v363, %v361
  %v500 = vpack.c.b16 %v364, %v362
  %v501 = vpack.c.b16 %v367, %v365
  %v502 = vpack.c.b16 %v368, %v366
  %v503 = vpack.c.b16 %v371, %v369
  %v504 = vpack.c.b16 %v372, %v370
  %v505 = vpack.c.b16 %v375, %v373
  %v506 = vpack.c.b16 %v376, %v374
  %v507 = vpack.c.b16 %v379, %v377
  %v508 = vpack.c.b16 %v380, %v378
  %v509 = vpack.c.b16 %v383, %v381
  %v510 = vpack.c.b16 %v384, %v382
  %v511 = vpack.c.b16 %v387, %v385
  %v512 = vpack.c.b16 %v388, %v386
  %v513 = vpack.c.b16 %v391, %v389
  %v514 = vpack.c.b16 %v392, %v390
  %v515 = vpack.c.b16 %v395, %v393
  %v516 = vpack.c.b16 %v396, %v394
  %v517 = vpack.c.b16 %v399, %v397
  %v518 = vpack.c.b16 %v400, %v398
  %v519 = vpack.c.b16 %v403, %v401
  %v520 = vpack.c.b16 %v404, %v402
  %v521 = vpack.c.b16 %v407, %v405
  %v522 = vpack.c.b16 %v408, %v406
  %v523 = vpack.c.b16 %v411, %v409
  %v524 = vpack.c.b16 %v412, %v410
  %v525 = vpack.c.b16 %v415, %v413
  %v526 = vpack.c.b16 %v416, %v414
  %v527 = vpack.c.b16 %v419, %v417
  %v528 = vpack.c.b16 %v420, %v418
  %v529 = vpack.c.b16 %v423, %v421
  %v530 = vpack.c.b16 %v424, %v422
  %v531 = vpack.c.b16 %v427, %v425
  %v532 = vpack.c.b16 %v428, %v426
  %v533 = vpack.c.b16 %v431, %v429
  %v534 = vpack.c.b16 %v432, %v430
  %v535 = vpack.c.b16 %v435, %v433
  %v536 = vpack.c.b16 %v436, %v434
  %v537 = vpack.c.b16 %v439, %v437
  %v538 = vpack.c.b16 %v440, %v438
  %vm637 = vcmask 130048
  %v639 = vsel %vm637, %v42, 0
  %641 = vmatpush.bf16.msra.mxu0 %v455
  %642 = vmatpush.bf16.msra.mxu0 %v453
  %643 = vmatpush.bf16.msra.mxu0 %v451
  %644 = vmatpush.bf16.msra.mxu0 %v449
  %645 = vmatpush.bf16.msra.mxu0 %v447
  %646 = vmatpush.bf16.msra.mxu0 %v445
  %647 = vmatpush.bf16.msra.mxu0 %v443
  %648 = vmatpush.bf16.msra.mxu0 %v441
  %649 = vmatmul.bf16.gmra.mxu0 %v36
  %v650 = vpop.f32.mrf.mxu0
  %v651 = vadd.f32 %v143, %v650
  %v652 = vpop.f32.mrf.mxu0
  %653 = vdwg.mxu0
  %654 = vmatpush.bf16.msra.mxu0 %v471
  %655 = vmatpush.bf16.msra.mxu0 %v469
  %656 = vmatpush.bf16.msra.mxu0 %v467
  %657 = vmatpush.bf16.msra.mxu0 %v465
  %658 = vmatpush.bf16.msra.mxu0 %v463
  %659 = vmatpush.bf16.msra.mxu0 %v461
  %660 = vmatpush.bf16.msra.mxu0 %v459
  %661 = vmatpush.bf16.msra.mxu0 %v457
  %662 = vmatmul.bf16.gmra.mxu0 %v37
  %v663 = vpop.f32.mrf.mxu0
  %v664 = vadd.f32 %v651, %v663
  %v665 = vpop.f32.mrf.mxu0
  %666 = vdwg.mxu0
  %667 = vmatpush.bf16.msra.mxu0 %v487
  %668 = vmatpush.bf16.msra.mxu0 %v485
  %669 = vmatpush.bf16.msra.mxu0 %v483
  %670 = vmatpush.bf16.msra.mxu0 %v481
  %671 = vmatpush.bf16.msra.mxu0 %v479
  %672 = vmatpush.bf16.msra.mxu0 %v477
  %673 = vmatpush.bf16.msra.mxu0 %v475
  %674 = vmatpush.bf16.msra.mxu0 %v473
  %675 = vmatmul.bf16.gmra.mxu0 %v38
  %v676 = vpop.f32.mrf.mxu0
  %v677 = vadd.f32 %v664, %v676
  %v678 = vpop.f32.mrf.mxu0
  %679 = vdwg.mxu0
  %680 = vmatpush.bf16.msra.mxu0 %v503
  %681 = vmatpush.bf16.msra.mxu0 %v501
  %682 = vmatpush.bf16.msra.mxu0 %v499
  %683 = vmatpush.bf16.msra.mxu0 %v497
  %684 = vmatpush.bf16.msra.mxu0 %v495
  %685 = vmatpush.bf16.msra.mxu0 %v493
  %686 = vmatpush.bf16.msra.mxu0 %v491
  %687 = vmatpush.bf16.msra.mxu0 %v489
  %688 = vmatmul.bf16.gmra.mxu0 %v39
  %v689 = vpop.f32.mrf.mxu0
  %v690 = vadd.f32 %v677, %v689
  %v691 = vpop.f32.mrf.mxu0
  %692 = vdwg.mxu0
  %693 = vmatpush.bf16.msra.mxu0 %v519
  %694 = vmatpush.bf16.msra.mxu0 %v517
  %695 = vmatpush.bf16.msra.mxu0 %v515
  %696 = vmatpush.bf16.msra.mxu0 %v513
  %697 = vmatpush.bf16.msra.mxu0 %v511
  %698 = vmatpush.bf16.msra.mxu0 %v509
  %699 = vmatpush.bf16.msra.mxu0 %v507
  %700 = vmatpush.bf16.msra.mxu0 %v505
  %701 = vmatmul.bf16.gmra.mxu0 %v40
  %v702 = vpop.f32.mrf.mxu0
  %v703 = vadd.f32 %v690, %v702
  %v704 = vpop.f32.mrf.mxu0
  %705 = vdwg.mxu0
  %706 = vmatpush.bf16.msra.mxu0 %v535
  %707 = vmatpush.bf16.msra.mxu0 %v533
  %708 = vmatpush.bf16.msra.mxu0 %v531
  %709 = vmatpush.bf16.msra.mxu0 %v529
  %710 = vmatpush.bf16.msra.mxu0 %v527
  %711 = vmatpush.bf16.msra.mxu0 %v525
  %712 = vmatpush.bf16.msra.mxu0 %v523
  %713 = vmatpush.bf16.msra.mxu0 %v521
  %714 = vmatmul.bf16.gmra.mxu0 %v41
  %v715 = vpop.f32.mrf.mxu0
  %v716 = vadd.f32 %v703, %v715
  %v717 = vpop.f32.mrf.mxu0
  %718 = vdwg.mxu0
  %719 = vmatpush.bf16.msra.mxu0 0
  %720 = vmatpush.bf16.msra.mxu0 0
  %721 = vmatpush.bf16.msra.mxu0 0
  %722 = vmatpush.bf16.msra.mxu0 0
  %723 = vmatpush.bf16.msra.mxu0 0
  %724 = vmatpush.bf16.msra.mxu0 0
  %725 = vmatpush.bf16.msra.mxu0 0
  %726 = vmatpush.bf16.msra.mxu0 %v537
  %727 = vmatmul.bf16.gmra.mxu0 %v639
  %v728 = vpop.f32.mrf.mxu0
  %v729 = vadd.f32 %v716, %v728
  %v730 = vpop.f32.mrf.mxu0
  %731 = vdwg.mxu0
  %732 = vmatpush.bf16.msra.mxu0 %v456
  %733 = vmatpush.bf16.msra.mxu0 %v454
  %734 = vmatpush.bf16.msra.mxu0 %v452
  %735 = vmatpush.bf16.msra.mxu0 %v450
  %736 = vmatpush.bf16.msra.mxu0 %v448
  %737 = vmatpush.bf16.msra.mxu0 %v446
  %738 = vmatpush.bf16.msra.mxu0 %v444
  %739 = vmatpush.bf16.msra.mxu0 %v442
  %740 = vmatmul.bf16.gmra.mxu0 %v36
  %v741 = vpop.f32.mrf.mxu0
  %v742 = vadd.f32 %v144, %v741
  %v743 = vpop.f32.mrf.mxu0
  %744 = vdwg.mxu0
  %745 = vmatpush.bf16.msra.mxu0 %v472
  %746 = vmatpush.bf16.msra.mxu0 %v470
  %747 = vmatpush.bf16.msra.mxu0 %v468
  %748 = vmatpush.bf16.msra.mxu0 %v466
  %749 = vmatpush.bf16.msra.mxu0 %v464
  %750 = vmatpush.bf16.msra.mxu0 %v462
  %751 = vmatpush.bf16.msra.mxu0 %v460
  %752 = vmatpush.bf16.msra.mxu0 %v458
  %753 = vmatmul.bf16.gmra.mxu0 %v37
  %v754 = vpop.f32.mrf.mxu0
  %v755 = vadd.f32 %v742, %v754
  %v756 = vpop.f32.mrf.mxu0
  %757 = vdwg.mxu0
  %758 = vmatpush.bf16.msra.mxu0 %v488
  %759 = vmatpush.bf16.msra.mxu0 %v486
  %760 = vmatpush.bf16.msra.mxu0 %v484
  %761 = vmatpush.bf16.msra.mxu0 %v482
  %762 = vmatpush.bf16.msra.mxu0 %v480
  %763 = vmatpush.bf16.msra.mxu0 %v478
  %764 = vmatpush.bf16.msra.mxu0 %v476
  %765 = vmatpush.bf16.msra.mxu0 %v474
  %766 = vmatmul.bf16.gmra.mxu0 %v38
  %v767 = vpop.f32.mrf.mxu0
  %v768 = vadd.f32 %v755, %v767
  %v769 = vpop.f32.mrf.mxu0
  %770 = vdwg.mxu0
  %771 = vmatpush.bf16.msra.mxu0 %v504
  %772 = vmatpush.bf16.msra.mxu0 %v502
  %773 = vmatpush.bf16.msra.mxu0 %v500
  %774 = vmatpush.bf16.msra.mxu0 %v498
  %775 = vmatpush.bf16.msra.mxu0 %v496
  %776 = vmatpush.bf16.msra.mxu0 %v494
  %777 = vmatpush.bf16.msra.mxu0 %v492
  %778 = vmatpush.bf16.msra.mxu0 %v490
  %779 = vmatmul.bf16.gmra.mxu0 %v39
  %v780 = vpop.f32.mrf.mxu0
  %v781 = vadd.f32 %v768, %v780
  %v782 = vpop.f32.mrf.mxu0
  %783 = vdwg.mxu0
  %784 = vmatpush.bf16.msra.mxu0 %v520
  %785 = vmatpush.bf16.msra.mxu0 %v518
  %786 = vmatpush.bf16.msra.mxu0 %v516
  %787 = vmatpush.bf16.msra.mxu0 %v514
  %788 = vmatpush.bf16.msra.mxu0 %v512
  %789 = vmatpush.bf16.msra.mxu0 %v510
  %790 = vmatpush.bf16.msra.mxu0 %v508
  %791 = vmatpush.bf16.msra.mxu0 %v506
  %792 = vmatmul.bf16.gmra.mxu0 %v40
  %v793 = vpop.f32.mrf.mxu0
  %v794 = vadd.f32 %v781, %v793
  %v795 = vpop.f32.mrf.mxu0
  %796 = vdwg.mxu0
  %797 = vmatpush.bf16.msra.mxu0 %v536
  %798 = vmatpush.bf16.msra.mxu0 %v534
  %799 = vmatpush.bf16.msra.mxu0 %v532
  %800 = vmatpush.bf16.msra.mxu0 %v530
  %801 = vmatpush.bf16.msra.mxu0 %v528
  %802 = vmatpush.bf16.msra.mxu0 %v526
  %803 = vmatpush.bf16.msra.mxu0 %v524
  %804 = vmatpush.bf16.msra.mxu0 %v522
  %805 = vmatmul.bf16.gmra.mxu0 %v41
  %v806 = vpop.f32.mrf.mxu0
  %v807 = vadd.f32 %v794, %v806
  %v808 = vpop.f32.mrf.mxu0
  %809 = vdwg.mxu0
  %810 = vmatpush.bf16.msra.mxu0 0
  %811 = vmatpush.bf16.msra.mxu0 0
  %812 = vmatpush.bf16.msra.mxu0 0
  %813 = vmatpush.bf16.msra.mxu0 0
  %814 = vmatpush.bf16.msra.mxu0 0
  %815 = vmatpush.bf16.msra.mxu0 0
  %816 = vmatpush.bf16.msra.mxu0 0
  %817 = vmatpush.bf16.msra.mxu0 %v538
  %818 = vmatmul.bf16.gmra.mxu0 %v639
  %v819 = vpop.f32.mrf.mxu0
  %v820 = vadd.f32 %v807, %v819
  %v821 = vpop.f32.mrf.mxu0
  %822 = vdwg.mxu0
  %vm823 = vcmp.gt.f32.partialorder %v729, 0.0
  %vm824 = vcmp.gt.f32.partialorder %v820, 0.0
  %v825 = vmul.f32 %v729, 0.2
  %v826 = vmul.f32 %v820, 0.2
  %v827 = vsel %vm823, %v729, %v825
  %v828 = vsel %vm824, %v820, %v826
  %v829 = vpack.c.bf16 %v827, %v827
  %v830 = vpack.c.bf16 %v828, %v828
  %v831 = vld [vmem:[%s3] sm:$0xff]
  %v832 = vld [vmem:[%s3 + $0x8] sm:$0xff]
  %v833 = vld [vmem:[%s3 + $0x10] sm:$0xff]
  %v834 = vld [vmem:[%s3 + $0x18] sm:$0xff]
  %v835 = vld [vmem:[%s3 + $0x20] sm:$0xff]
  %v836 = vld [vmem:[%s3 + $0x28] sm:$0xff]
  %v837 = vld [vmem:[%s3 + $0x30] sm:$0xff]
  %v838 = vld [vmem:[%s3 + $0x38] sm:$0xff]
  %v839 = vld [vmem:[%s3 + $0x40] sm:$0xff]
  %v840 = vld [vmem:[%s3 + $0x48] sm:$0xff]
  %v841 = vld [vmem:[%s3 + $0x50] sm:$0xff]
  %v842 = vld [vmem:[%s3 + $0x58] sm:$0xff]
  %v843 = vld [vmem:[%s3 + $0x60] sm:$0xff]
  %v844 = vld [vmem:[%s3 + $0x68] sm:$0xff]
  %v845 = vld [vmem:[%s3 + $0x70] sm:$0xff]
  %v846 = vld [vmem:[%s3 + $0x78] sm:$0xff]
  %v847 = vld [vmem:[%s3 + $0x80] sm:$0xff]
  %v848 = vld [vmem:[%s3 + $0x88] sm:$0xff]
  %v849 = vld [vmem:[%s3 + $0x90] sm:$0xff]
  %v850 = vld [vmem:[%s3 + $0x98] sm:$0xff]
  %v851 = vld [vmem:[%s3 + $0xa0] sm:$0xff]
  %v852 = vld [vmem:[%s3 + $0xa8] sm:$0xff]
  %v853 = vld [vmem:[%s3 + $0xb0] sm:$0xff]
  %v854 = vld [vmem:[%s3 + $0xb8] sm:$0xff]
  %v855 = vld [vmem:[%s3 + $0xc0] sm:$0xff]
  %v856 = vld [vmem:[%s3 + $0xc8] sm:$0xff]
  %v857 = vld [vmem:[%s3 + $0xd0] sm:$0xff]
  %v858 = vld [vmem:[%s3 + $0xd8] sm:$0xff]
  %v859 = vld [vmem:[%s3 + $0xe0] sm:$0xff]
  %v860 = vld [vmem:[%s3 + $0xe8] sm:$0xff]
  %v861 = vld [vmem:[%s3 + $0xf0] sm:$0xff]
  %v862 = vld [vmem:[%s3 + $0xf8] sm:$0xff]
  %v863 = vld [vmem:[%s4] sm:$0x3]
  %v865 = vperm.slane %v863, 0
  %v866 = vperm.slane %v863, 1
  %v901 = vunpack.c.l.b16 %v831
  %v902 = vunpack.c.h.b16 %v831
  %v903 = vunpack.c.l.b16 %v832
  %v904 = vunpack.c.h.b16 %v832
  %v905 = vunpack.c.l.b16 %v833
  %v906 = vunpack.c.h.b16 %v833
  %v907 = vunpack.c.l.b16 %v834
  %v908 = vunpack.c.h.b16 %v834
  %v909 = vunpack.c.l.b16 %v835
  %v910 = vunpack.c.h.b16 %v835
  %v911 = vunpack.c.l.b16 %v836
  %v912 = vunpack.c.h.b16 %v836
  %v913 = vunpack.c.l.b16 %v837
  %v914 = vunpack.c.h.b16 %v837
  %v915 = vunpack.c.l.b16 %v838
  %v916 = vunpack.c.h.b16 %v838
  %v917 = vunpack.c.l.b16 %v839
  %v918 = vunpack.c.h.b16 %v839
  %v919 = vunpack.c.l.b16 %v840
  %v920 = vunpack.c.h.b16 %v840
  %v921 = vunpack.c.l.b16 %v841
  %v922 = vunpack.c.h.b16 %v841
  %v923 = vunpack.c.l.b16 %v842
  %v924 = vunpack.c.h.b16 %v842
  %v925 = vunpack.c.l.b16 %v843
  %v926 = vunpack.c.h.b16 %v843
  %v927 = vunpack.c.l.b16 %v844
  %v928 = vunpack.c.h.b16 %v844
  %v929 = vunpack.c.l.b16 %v845
  %v930 = vunpack.c.h.b16 %v845
  %v931 = vunpack.c.l.b16 %v846
  %v932 = vunpack.c.h.b16 %v846
  %v933 = vunpack.c.l.b16 %v847
  %v934 = vunpack.c.h.b16 %v847
  %v935 = vunpack.c.l.b16 %v848
  %v936 = vunpack.c.h.b16 %v848
  %v937 = vunpack.c.l.b16 %v849
  %v938 = vunpack.c.h.b16 %v849
  %v939 = vunpack.c.l.b16 %v850
  %v940 = vunpack.c.h.b16 %v850
  %v941 = vunpack.c.l.b16 %v851
  %v942 = vunpack.c.h.b16 %v851
  %v943 = vunpack.c.l.b16 %v852
  %v944 = vunpack.c.h.b16 %v852
  %v945 = vunpack.c.l.b16 %v853
  %v946 = vunpack.c.h.b16 %v853
  %v947 = vunpack.c.l.b16 %v854
  %v948 = vunpack.c.h.b16 %v854
  %v949 = vunpack.c.l.b16 %v855
  %v950 = vunpack.c.h.b16 %v855
  %v951 = vunpack.c.l.b16 %v856
  %v952 = vunpack.c.h.b16 %v856
  %v953 = vunpack.c.l.b16 %v857
  %v954 = vunpack.c.h.b16 %v857
  %v955 = vunpack.c.l.b16 %v858
  %v956 = vunpack.c.h.b16 %v858
  %v957 = vunpack.c.l.b16 %v859
  %v958 = vunpack.c.h.b16 %v859
  %v959 = vunpack.c.l.b16 %v860
  %v960 = vunpack.c.h.b16 %v860
  %v961 = vunpack.c.l.b16 %v861
  %v962 = vunpack.c.h.b16 %v861
  %v963 = vunpack.c.l.b16 %v862
  %v964 = vunpack.c.h.b16 %v862
  %v965 = vpack.c.b16 %v903, %v901
  %v966 = vpack.c.b16 %v904, %v902
  %v967 = vpack.c.b16 %v907, %v905
  %v968 = vpack.c.b16 %v908, %v906
  %v969 = vpack.c.b16 %v911, %v909
  %v970 = vpack.c.b16 %v912, %v910
  %v971 = vpack.c.b16 %v915, %v913
  %v972 = vpack.c.b16 %v916, %v914
  %v973 = vpack.c.b16 %v919, %v917
  %v974 = vpack.c.b16 %v920, %v918
  %v975 = vpack.c.b16 %v923, %v921
  %v976 = vpack.c.b16 %v924, %v922
  %v977 = vpack.c.b16 %v927, %v925
  %v978 = vpack.c.b16 %v928, %v926
  %v979 = vpack.c.b16 %v931, %v929
  %v980 = vpack.c.b16 %v932, %v930
  %v981 = vpack.c.b16 %v935, %v933
  %v982 = vpack.c.b16 %v936, %v934
  %v983 = vpack.c.b16 %v939, %v937
  %v984 = vpack.c.b16 %v940, %v938
  %v985 = vpack.c.b16 %v943, %v941
  %v986 = vpack.c.b16 %v944, %v942
  %v987 = vpack.c.b16 %v947, %v945
  %v988 = vpack.c.b16 %v948, %v946
  %v989 = vpack.c.b16 %v951, %v949
  %v990 = vpack.c.b16 %v952, %v950
  %v991 = vpack.c.b16 %v955, %v953
  %v992 = vpack.c.b16 %v956, %v954
  %v993 = vpack.c.b16 %v959, %v957
  %v994 = vpack.c.b16 %v960, %v958
  %v995 = vpack.c.b16 %v963, %v961
  %v996 = vpack.c.b16 %v964, %v962
  %1029 = vmatpush.bf16.msra.mxu0 %v979
  %1030 = vmatpush.bf16.msra.mxu0 %v977
  %1031 = vmatpush.bf16.msra.mxu0 %v975
  %1032 = vmatpush.bf16.msra.mxu0 %v973
  %1033 = vmatpush.bf16.msra.mxu0 %v971
  %1034 = vmatpush.bf16.msra.mxu0 %v969
  %1035 = vmatpush.bf16.msra.mxu0 %v967
  %1036 = vmatpush.bf16.msra.mxu0 %v965
  %1037 = vmatmul.bf16.gmra.mxu0 %v829
  %v1038 = vpop.f32.mrf.mxu0
  %v1039 = vadd.f32 %v865, %v1038
  %v1040 = vpop.f32.mrf.mxu0
  %1041 = vdwg.mxu0
  %1042 = vmatpush.bf16.msra.mxu0 %v995
  %1043 = vmatpush.bf16.msra.mxu0 %v993
  %1044 = vmatpush.bf16.msra.mxu0 %v991
  %1045 = vmatpush.bf16.msra.mxu0 %v989
  %1046 = vmatpush.bf16.msra.mxu0 %v987
  %1047 = vmatpush.bf16.msra.mxu0 %v985
  %1048 = vmatpush.bf16.msra.mxu0 %v983
  %1049 = vmatpush.bf16.msra.mxu0 %v981
  %1050 = vmatmul.bf16.gmra.mxu0 %v830
  %v1051 = vpop.f32.mrf.mxu0
  %v1052 = vadd.f32 %v1039, %v1051
  %v1053 = vpop.f32.mrf.mxu0
  %1054 = vdwg.mxu0
  %1055 = vmatpush.bf16.msra.mxu0 %v980
  %1056 = vmatpush.bf16.msra.mxu0 %v978
  %1057 = vmatpush.bf16.msra.mxu0 %v976
  %1058 = vmatpush.bf16.msra.mxu0 %v974
  %1059 = vmatpush.bf16.msra.mxu0 %v972
  %1060 = vmatpush.bf16.msra.mxu0 %v970
  %1061 = vmatpush.bf16.msra.mxu0 %v968
  %1062 = vmatpush.bf16.msra.mxu0 %v966
  %1063 = vmatmul.bf16.gmra.mxu0 %v829
  %v1064 = vpop.f32.mrf.mxu0
  %v1065 = vadd.f32 %v866, %v1064
  %v1066 = vpop.f32.mrf.mxu0
  %1067 = vdwg.mxu0
  %1068 = vmatpush.bf16.msra.mxu0 %v996
  %1069 = vmatpush.bf16.msra.mxu0 %v994
  %1070 = vmatpush.bf16.msra.mxu0 %v992
  %1071 = vmatpush.bf16.msra.mxu0 %v990
  %1072 = vmatpush.bf16.msra.mxu0 %v988
  %1073 = vmatpush.bf16.msra.mxu0 %v986
  %1074 = vmatpush.bf16.msra.mxu0 %v984
  %1075 = vmatpush.bf16.msra.mxu0 %v982
  %1076 = vmatmul.bf16.gmra.mxu0 %v830
  %v1077 = vpop.f32.mrf.mxu0
  %v1078 = vadd.f32 %v1065, %v1077
  %v1079 = vpop.f32.mrf.mxu0
  %1080 = vdwg.mxu0
  %vm1081 = vcmp.gt.f32.partialorder %v1052, 0.0
  %vm1082 = vcmp.gt.f32.partialorder %v1078, 0.0
  %v1083 = vmul.f32 %v1052, 0.2
  %v1084 = vmul.f32 %v1078, 0.2
  %v1085 = vsel %vm1081, %v1052, %v1083
  %v1086 = vsel %vm1082, %v1078, %v1084
  %v1087 = vpack.c.bf16 %v1085, %v1085
  %v1088 = vpack.c.bf16 %v1086, %v1086
  %v1089 = vld [vmem:[%s5] sm:$0xf]
  %v1090 = vld [vmem:[%s5 + $0x4] sm:$0xf]
  %v1091 = vld [vmem:[%s5 + $0x8] sm:$0xf]
  %v1092 = vld [vmem:[%s5 + $0xc] sm:$0xf]
  %v1093 = vld [vmem:[%s5 + $0x10] sm:$0xf]
  %v1094 = vld [vmem:[%s5 + $0x14] sm:$0xf]
  %v1095 = vld [vmem:[%s5 + $0x18] sm:$0xf]
  %v1096 = vld [vmem:[%s5 + $0x1c] sm:$0xf]
  %v1097 = vld [vmem:[%s5 + $0x20] sm:$0xf]
  %v1098 = vld [vmem:[%s5 + $0x24] sm:$0xf]
  %v1099 = vld [vmem:[%s5 + $0x28] sm:$0xf]
  %v1100 = vld [vmem:[%s5 + $0x2c] sm:$0xf]
  %v1101 = vld [vmem:[%s5 + $0x30] sm:$0xf]
  %v1102 = vld [vmem:[%s5 + $0x34] sm:$0xf]
  %v1103 = vld [vmem:[%s5 + $0x38] sm:$0xf]
  %v1104 = vld [vmem:[%s5 + $0x3c] sm:$0xf]
  %v1105 = vld [vmem:[%s5 + $0x40] sm:$0xf]
  %v1106 = vld [vmem:[%s5 + $0x44] sm:$0xf]
  %v1107 = vld [vmem:[%s5 + $0x48] sm:$0xf]
  %v1108 = vld [vmem:[%s5 + $0x4c] sm:$0xf]
  %v1109 = vld [vmem:[%s5 + $0x50] sm:$0xf]
  %v1110 = vld [vmem:[%s5 + $0x54] sm:$0xf]
  %v1111 = vld [vmem:[%s5 + $0x58] sm:$0xf]
  %v1112 = vld [vmem:[%s5 + $0x5c] sm:$0xf]
  %v1113 = vld [vmem:[%s5 + $0x60] sm:$0xf]
  %v1114 = vld [vmem:[%s5 + $0x64] sm:$0xf]
  %v1115 = vld [vmem:[%s5 + $0x68] sm:$0xf]
  %v1116 = vld [vmem:[%s5 + $0x6c] sm:$0xf]
  %v1117 = vld [vmem:[%s5 + $0x70] sm:$0xf]
  %v1118 = vld [vmem:[%s5 + $0x74] sm:$0xf]
  %v1119 = vld [vmem:[%s5 + $0x78] sm:$0xf]
  %v1120 = vld [vmem:[%s5 + $0x7c] sm:$0xf]
  %v1153 = vunpack.c.l.b16 %v1089
  %v1154 = vunpack.c.l.b16 %v1090
  %v1155 = vunpack.c.l.b16 %v1091
  %v1156 = vunpack.c.l.b16 %v1092
  %v1157 = vunpack.c.l.b16 %v1093
  %v1158 = vunpack.c.l.b16 %v1094
  %v1159 = vunpack.c.l.b16 %v1095
  %v1160 = vunpack.c.l.b16 %v1096
  %v1161 = vunpack.c.l.b16 %v1097
  %v1162 = vunpack.c.l.b16 %v1098
  %v1163 = vunpack.c.l.b16 %v1099
  %v1164 = vunpack.c.l.b16 %v1100
  %v1165 = vunpack.c.l.b16 %v1101
  %v1166 = vunpack.c.l.b16 %v1102
  %v1167 = vunpack.c.l.b16 %v1103
  %v1168 = vunpack.c.l.b16 %v1104
  %v1169 = vunpack.c.l.b16 %v1105
  %v1170 = vunpack.c.l.b16 %v1106
  %v1171 = vunpack.c.l.b16 %v1107
  %v1172 = vunpack.c.l.b16 %v1108
  %v1173 = vunpack.c.l.b16 %v1109
  %v1174 = vunpack.c.l.b16 %v1110
  %v1175 = vunpack.c.l.b16 %v1111
  %v1176 = vunpack.c.l.b16 %v1112
  %v1177 = vunpack.c.l.b16 %v1113
  %v1178 = vunpack.c.l.b16 %v1114
  %v1179 = vunpack.c.l.b16 %v1115
  %v1180 = vunpack.c.l.b16 %v1116
  %v1181 = vunpack.c.l.b16 %v1117
  %v1182 = vunpack.c.l.b16 %v1118
  %v1183 = vunpack.c.l.b16 %v1119
  %v1184 = vunpack.c.l.b16 %v1120
  %v1185 = vpack.c.b16 %v1154, %v1153
  %v1186 = vpack.c.b16 %v1156, %v1155
  %v1187 = vpack.c.b16 %v1158, %v1157
  %v1188 = vpack.c.b16 %v1160, %v1159
  %v1189 = vpack.c.b16 %v1162, %v1161
  %v1190 = vpack.c.b16 %v1164, %v1163
  %v1191 = vpack.c.b16 %v1166, %v1165
  %v1192 = vpack.c.b16 %v1168, %v1167
  %v1193 = vpack.c.b16 %v1170, %v1169
  %v1194 = vpack.c.b16 %v1172, %v1171
  %v1195 = vpack.c.b16 %v1174, %v1173
  %v1196 = vpack.c.b16 %v1176, %v1175
  %v1197 = vpack.c.b16 %v1178, %v1177
  %v1198 = vpack.c.b16 %v1180, %v1179
  %v1199 = vpack.c.b16 %v1182, %v1181
  %v1200 = vpack.c.b16 %v1184, %v1183
  %1217 = vmatpush.bf16.msra.mxu0 %v1192
  %1218 = vmatpush.bf16.msra.mxu0 %v1191
  %1219 = vmatpush.bf16.msra.mxu0 %v1190
  %1220 = vmatpush.bf16.msra.mxu0 %v1189
  %1221 = vmatpush.bf16.msra.mxu0 %v1188
  %1222 = vmatpush.bf16.msra.mxu0 %v1187
  %1223 = vmatpush.bf16.msra.mxu0 %v1186
  %1224 = vmatpush.bf16.msra.mxu0 %v1185
  %1225 = vmatmul.bf16.gmra.mxu0 %v1087
  %v1226 = vpop.f32.mrf.mxu0
  %v1227 = vadd.f32 0.0, %v1226
  %v1228 = vpop.f32.mrf.mxu0
  %1229 = vdwg.mxu0
  %1230 = vmatpush.bf16.msra.mxu0 %v1200
  %1231 = vmatpush.bf16.msra.mxu0 %v1199
  %1232 = vmatpush.bf16.msra.mxu0 %v1198
  %1233 = vmatpush.bf16.msra.mxu0 %v1197
  %1234 = vmatpush.bf16.msra.mxu0 %v1196
  %1235 = vmatpush.bf16.msra.mxu0 %v1195
  %1236 = vmatpush.bf16.msra.mxu0 %v1194
  %1237 = vmatpush.bf16.msra.mxu0 %v1193
  %1238 = vmatmul.bf16.gmra.mxu0 %v1088
  %v1239 = vpop.f32.mrf.mxu0
  %v1240 = vadd.f32 %v1227, %v1239
  %v1241 = vpop.f32.mrf.mxu0
  %1242 = vdwg.mxu0
  %v1243 = vld [vmem:[#allocation2] sm:$0x1]
  %v1245 = vperm.slane %v1243, 0
  %v1247 = vadd.f32 %v1240, %v1245
  %v1248 = vsub.f32 0.0, %v1247
  %v1249 = vmul.f32 %v1248, 1.442695
  %v1250 = vpow.pop %v1249
  %v1251 = vadd.f32 %v1250, 1.0
  %v1252 = vrcp.pop %v1251
  %v1253 = vmul.f32 %v1251, %v1252
  %v1254 = vsub.f32 1.0, %v1253
  %v1255 = vmul.f32 %v1252, %v1254
  %v1256 = vadd.f32 %v1252, %v1255
  %vm1257 = vweird.f32 %v1251
  %vm1258 = vweird.f32 %v1252
  %vm1259 = vmor %vm1257, %vm1258
  %v1260 = vsel %vm1259, %v1252, %v1256
  %v1261 = vand.u32 2147483647, %v1251
  %vm1262 = vcmp.eq.f32.partialorder %v1261, 8.507059e+37
  %v1263 = vand.u32 %v1251, 2147483648
  %v1264 = vor.u32 1.1754944e-38, %v1263
  %v1265 = vsel %vm1262, %v1264, %v1260
  %vm1266 = vcmask 7168
  %1267 = vst.msk [vmem:[%s7] sm:$0xff] %vm1266, %v1265
  // Predicated region
  $region30: #{discriminator_forward.1} parent=0 // pred_check
    _
  $region31: #{discriminator_forward.1} parent=0 // pred_check_branch
    %1269 = sbr.rel (0) target = $region33
  $region32: #{discriminator_forward.1} parent=0 // pred_region
    _
  $region33: #{discriminator_forward.1} parent=0 // pred_fallthru
    _
  // Predicated region
  $region34: #{discriminator_forward.1} parent=0 // pred_check
    _
  $region35: #{discriminator_forward.1} parent=0 // pred_check_branch
    %1271 = sbr.rel (0) target = $region37
  $region36: #{discriminator_forward.1} parent=0 // pred_region
    _
  $region37: #{discriminator_forward.1} parent=0 // pred_fallthru
    _

</llo_original>
